<compile_context>
chip_gen: v7x
topology: tpu7x:2x2x1
jax: 0.10.0
libtpu: 0.0.40
codegen_flags: <defaults>
</compile_context>

<pallas_src>
import math

import numpy as np
import jax
import jax.numpy as jnp
from jax.experimental import pallas as pl
from jax.experimental.pallas import tpu as pltpu


def _round_up(x, m):
    return ((x + m - 1) // m) * m


def _pad2(a, rows, cols):
    pr, pc = rows - a.shape[0], cols - a.shape[1]
    if pr == 0 and pc == 0:
        return a
    return jnp.pad(a, ((0, pr), (0, pc)))


def _choose_tiles(B, M, G, tm_max, tn_max, tk_max):
    """Lane/sublane aligned tiles; favor large tiles and >=2 parallel j blocks."""
    tm = min(tm_max, _round_up(max(B, 1), 8))
    Mp0 = _round_up(max(M, 1), 128)
    Gp0 = _round_up(max(G, 1), 128)

    # tn: cap, but keep >= 2 blocks along the (parallel) j axis when M allows,
    # so both v7x TensorCores get work even on small/inference shapes.
    tn = min(tn_max, Mp0)
    if Mp0 // tn < 2 and Mp0 >= 256:
        tn = max(128, (Mp0 // 2 // 128) * 128)

    # tk: take the whole padded contraction when it fits (collapses the k axis
    # and drops per-(i, j) init/finalize), else cap.
    tk = min(tk_max, Gp0)
    return tm, tn, tk


def fold_mask(weight, mask):
    """One-time static fold of the mask into the weight.

    weight: (M, G), mask: (G, M)  ->  masked weight in (G, M) layout,
    i.e. (weight * mask.T).T, ready for a plain NN matmul in the kernel.
    """
    return weight.T * mask


def sparse_go_kernel(x_ref, w_ref, rs_ref, b_ref, out_ref, acc_ref):
    """Tiles: x (tm, tk), w (tk, tn), rs (tm, 1) f32, b (1, tn) f32,
    out (tm, tn) f32; scratch: acc (tm, tn) f32."""
    k = pl.program_id(2)

    @pl.when(k == 0)
    def _():
        acc_ref[...] = jnp.zeros_like(acc_ref)

    # Pure MXU work in the inner loop (inputs already in compute dtype).
    acc_ref[...] += jnp.dot(x_ref[...], w_ref[...],
                            preferred_element_type=jnp.float32)

    @pl.when(k == pl.num_programs(2) - 1)
    def _():
        # Exact bias rewrite: x @ (A + 1 (x) b) = x @ A + rowsum(x) * b.
        out_ref[...] = (acc_ref[...] + rs_ref[...] * b_ref[...]).astype(
            out_ref.dtype)


def sparse_go_forward(x, w_masked_gm, bias, *, compute_dtype=jnp.float32,
                      tm_max=512, tn_max=512, tk_max=2048):
    """SparseGO forward.

    x:           (B, G) float32
    w_masked_gm: (G, M)          -- pre-folded masked weight (see fold_mask)
    bias:        (M,)   float32
    returns:     (B, M) float32
    """
    B, G = x.shape
    G2, M = w_masked_gm.shape
    assert G2 == G, "masked weight / x contraction mismatch"

    tm, tn, tk = _choose_tiles(B, M, G, tm_max, tn_max, tk_max)
    Bp, Mp, Gp = _round_up(B, tm), _round_up(M, tn), _round_up(G, tk)

    # Zero-pad to aligned shapes (padding contributes exact zeros).  In
    # production the folded weight would be stored pre-padded, making wp free.
    xp = _pad2(x, Bp, Gp).astype(compute_dtype)
    wp = _pad2(w_masked_gm, Gp, Mp).astype(compute_dtype)
    bp = _pad2(bias.reshape(1, M).astype(jnp.float32), 1, Mp)
    # rowsum(x) hoisted out of the kernel's k loop (exact, O(B*G), f32).
    rsp = _pad2(jnp.sum(x, axis=1, keepdims=True).astype(jnp.float32), Bp, 1)

    grid = (Bp // tm, Mp // tn, Gp // tk)

    out_padded = pl.pallas_call(
        sparse_go_kernel,
        out_shape=jax.ShapeDtypeStruct((Bp, Mp), jnp.float32),
        grid_spec=pltpu.PrefetchScalarGridSpec(
            num_scalar_prefetch=0,
            grid=grid,
            in_specs=[
                pl.BlockSpec((tm, tk), lambda i, j, k: (i, k)),   # x
                pl.BlockSpec((tk, tn), lambda i, j, k: (k, j)),   # masked W (G,M)
                pl.BlockSpec((tm, 1), lambda i, j, k: (i, 0)),    # rowsum(x)
                pl.BlockSpec((1, tn), lambda i, j, k: (0, j)),    # bias row
            ],
            out_specs=pl.BlockSpec((tm, tn), lambda i, j, k: (i, j)),
            scratch_shapes=[pltpu.VMEM((tm, tn), jnp.float32)],   # f32 acc
        ),
        compiler_params=pltpu.CompilerParams(
            dimension_semantics=("parallel", "parallel", "arbitrary"),
            vmem_limit_bytes=32 * 1024 * 1024,   # max tile plan ~20 MiB: v7x-safe
        ),
    )(xp, wp, rsp, bp)

    if Bp != B or Mp != M:
        return out_padded[:B, :M]
    return out_padded


def build_mask_np(input_genes, middle_layer, latent_go, relation_dict):
    """Replicates the mask construction loop from SparseGO.__init__ (host side)."""
    nmult = middle_layer // latent_go
    mask = np.zeros((input_genes, middle_layer), dtype=np.float32)
    for i in range(input_genes):
        for lg in relation_dict[i]:
            for j in range(nmult):
                mask[i, nmult * lg + j] = 1.0
    return mask


def _make_case(key, batch, input_genes, middle_layer, latent_go):
    """Deterministic params + input matching SparseGO.__init__ / forward."""
    relation_dict = {
        i: [i % latent_go, (i * 7 + 3) % latent_go] for i in range(input_genes)
    }
    k_w, k_b, k_x = jax.random.split(key, 3)
    # kaiming_uniform_(a=sqrt(5)) on (M, G): bound = 1/sqrt(fan_in), fan_in = G.
    bound = 1.0 / math.sqrt(input_genes)
    weight = jax.random.uniform(k_w, (middle_layer, input_genes),
                                dtype=jnp.float32, minval=-bound, maxval=bound)
    bias = jax.random.uniform(k_b, (middle_layer,), dtype=jnp.float32,
                              minval=-bound, maxval=bound)
    mask = jnp.asarray(
        build_mask_np(input_genes, middle_layer, latent_go, relation_dict),
        dtype=jnp.float32)                                      # (G, M)
    x = jax.random.normal(k_x, (batch, input_genes), dtype=jnp.float32)
    ref = x @ ((weight * mask.T).T + bias)                      # PyTorch forward
    return x, weight, mask, bias, ref


if __name__ == "__main__":
    key = jax.random.PRNGKey(0)
    k1, k2 = jax.random.split(key)

    # --- Case 1: small shapes, single-block grid, f32 compute -------------
    x, weight, mask, bias, ref = _make_case(
        k1, batch=4, input_genes=16, middle_layer=32, latent_go=8)
    w_gm = fold_mask(weight, mask)                              # one-time static fold
    out = jax.block_until_ready(sparse_go_forward(x, w_gm, bias))
    assert out.shape == ref.shape
    assert jnp.allclose(out, ref, atol=1e-4, rtol=1e-4), "case1 mismatch"

    # --- Case 2: multi-block (i, j, k) grid, f32 compute -------------------
    # Small shapes but tiny tile caps to exercise accumulation / finalize.
    x2, weight2, mask2, bias2, ref2 = _make_case(
        k2, batch=16, input_genes=384, middle_layer=256, latent_go=16)
    w_gm2 = fold_mask(weight2, mask2)
    out2 = jax.block_until_ready(
        sparse_go_forward(x2, w_gm2, bias2, tm_max=8, tn_max=128, tk_max=128))
    assert jnp.allclose(out2, ref2, atol=1e-3, rtol=1e-3), "case2 mismatch"

    # --- Case 3: bf16 storage + MXU compute path (f32 accumulation) --------
    out3 = jax.block_until_ready(
        sparse_go_forward(x2, w_gm2, bias2, compute_dtype=jnp.bfloat16))
    err = jnp.max(jnp.abs(out3 - ref2))
    tol = 5e-2 * (jnp.max(jnp.abs(ref2)) + 1.0)
    assert err <= tol, f"case3 (bf16) mismatch: {err} > {tol}"

    print("KERNEL_OK")
</pallas_src>

<mosaic_0001>
module attributes {stable_mosaic.version = 11 : i64} {
  func.func @sparse_go_kernel(%arg0: i32, %arg1: i32, %arg2: i32, %arg3: memref<8x128xf32, #tpu.memory_space<vmem>>, %arg4: memref<128x128xf32, #tpu.memory_space<vmem>>, %arg5: memref<8x1xf32, #tpu.memory_space<vmem>>, %arg6: memref<1x128xf32, #tpu.memory_space<vmem>>, %arg7: memref<8x128xf32, #tpu.memory_space<vmem>>, %arg8: memref<8x128xf32, #tpu.memory_space<vmem>>) attributes {dimension_semantics = [#tpu.dimension_semantics<parallel>, #tpu.dimension_semantics<parallel>, #tpu.dimension_semantics<arbitrary>], iteration_bounds = array<i64: 1, 1, 1>, scalar_prefetch = 0 : i64, scratch_operands = 1 : i64, tpu.core_type = #tpu.core_type<tc>, window_params = [{transform_indices = @transform_0, window_bounds = array<i64: 8, 128>}, {transform_indices = @transform_1, window_bounds = array<i64: 128, 128>}, {transform_indices = @transform_2, window_bounds = array<i64: 8, 1>}, {transform_indices = @transform_3, window_bounds = array<i64: 1, 128>}, {transform_indices = @transform_4, window_bounds = array<i64: 8, 128>}]} {
    %c0_i32 = arith.constant 0 : i32
    %0 = arith.cmpi eq, %arg2, %c0_i32 : i32
    %1 = arith.extui %0 : i1 to i32
    %c0_i32_0 = arith.constant 0 : i32
    %2 = arith.cmpi ne, %1, %c0_i32_0 : i32
    scf.if %2 {
      %cst_10 = arith.constant 0.000000e+00 : f32
      %12 = vector.broadcast %cst_10 : f32 to vector<8x128xf32>
      %c0_11 = arith.constant 0 : index
      %c0_12 = arith.constant 0 : index
      %13 = vector.load %arg8[%c0_11, %c0_12] : memref<8x128xf32, #tpu.memory_space<vmem>>, vector<8x128xf32>
      tpu.vector_store %arg8[%c0_11, %c0_12], %12 {strides = array<i32>} : memref<8x128xf32, #tpu.memory_space<vmem>>, vector<8x128xf32>,
    } else {
    }
    %c0 = arith.constant 0 : index
    %c0_1 = arith.constant 0 : index
    %3 = vector.load %arg8[%c0, %c0_1] : memref<8x128xf32, #tpu.memory_space<vmem>>, vector<8x128xf32>
    %c0_2 = arith.constant 0 : index
    %c0_3 = arith.constant 0 : index
    %4 = vector.load %arg3[%c0_2, %c0_3] : memref<8x128xf32, #tpu.memory_space<vmem>>, vector<8x128xf32>
    %c0_4 = arith.constant 0 : index
    %c0_5 = arith.constant 0 : index
    %5 = vector.load %arg4[%c0_4, %c0_5] : memref<128x128xf32, #tpu.memory_space<vmem>>, vector<128x128xf32>
    %cst = arith.constant dense<0.000000e+00> : vector<8x128xf32>
    %6 = tpu.matmul %4, %5, %cst {dimension_numbers = #tpu.dot_dimension_numbers<[1], [0], [0], [1], [0, 0, 1, 1], [], []>} : vector<8x128xf32>, vector<128x128xf32>, vector<8x128xf32> -> vector<8x128xf32>
    %7 = arith.addf %3, %6 : vector<8x128xf32>
    %c0_6 = arith.constant 0 : index
    %c0_7 = arith.constant 0 : index
    %8 = vector.load %arg8[%c0_6, %c0_7] : memref<8x128xf32, #tpu.memory_space<vmem>>, vector<8x128xf32>
    tpu.vector_store %arg8[%c0_6, %c0_7], %7 {strides = array<i32>} : memref<8x128xf32, #tpu.memory_space<vmem>>, vector<8x128xf32>,
    %c0_i32_8 = arith.constant 0 : i32
    %9 = arith.cmpi eq, %arg2, %c0_i32_8 : i32
    %10 = arith.extui %9 : i1 to i32
    %c0_i32_9 = arith.constant 0 : i32
    %11 = arith.cmpi ne, %10, %c0_i32_9 : i32
    scf.if %11 {
      %c0_10 = arith.constant 0 : index
      %c0_11 = arith.constant 0 : index
      %12 = vector.load %arg8[%c0_10, %c0_11] : memref<8x128xf32, #tpu.memory_space<vmem>>, vector<8x128xf32>
      %c0_12 = arith.constant 0 : index
      %c0_13 = arith.constant 0 : index
      %13 = vector.load %arg5[%c0_12, %c0_13] : memref<8x1xf32, #tpu.memory_space<vmem>>, vector<8x1xf32>
      %c0_14 = arith.constant 0 : index
      %c0_15 = arith.constant 0 : index
      %14 = vector.load %arg6[%c0_14, %c0_15] : memref<1x128xf32, #tpu.memory_space<vmem>>, vector<1x128xf32>
      %15 = vector.broadcast %13 : vector<8x1xf32> to vector<8x128xf32>
      %16 = vector.broadcast %14 : vector<1x128xf32> to vector<8x128xf32>
      %17 = arith.mulf %15, %16 : vector<8x128xf32>
      %18 = arith.addf %12, %17 : vector<8x128xf32>
      %c0_16 = arith.constant 0 : index
      %c0_17 = arith.constant 0 : index
      %19 = vector.load %arg7[%c0_16, %c0_17] : memref<8x128xf32, #tpu.memory_space<vmem>>, vector<8x128xf32>
      tpu.vector_store %arg7[%c0_16, %c0_17], %18 {strides = array<i32>} : memref<8x128xf32, #tpu.memory_space<vmem>>, vector<8x128xf32>,
    } else {
    }
    return
  }
  func.func @transform_0(%arg0: i32, %arg1: i32, %arg2: i32) -> (i32, i32) {
    %c0_i32 = arith.constant 0 : i32
    return %arg0, %arg2 : i32, i32
  }
  func.func @transform_1(%arg0: i32, %arg1: i32, %arg2: i32) -> (i32, i32) {
    %c0_i32 = arith.constant 0 : i32
    return %arg2, %arg1 : i32, i32
  }
  func.func @transform_2(%arg0: i32, %arg1: i32, %arg2: i32) -> (i32, i32) {
    %c0_i32 = arith.constant 0 : i32
    %c0_i32_0 = arith.constant 0 : i32
    return %arg0, %c0_i32 : i32, i32
  }
  func.func @transform_3(%arg0: i32, %arg1: i32, %arg2: i32) -> (i32, i32) {
    %c0_i32 = arith.constant 0 : i32
    %c0_i32_0 = arith.constant 0 : i32
    return %c0_i32, %arg1 : i32, i32
  }
  func.func @transform_4(%arg0: i32, %arg1: i32, %arg2: i32) -> (i32, i32) {
    %c0_i32 = arith.constant 0 : i32
    return %arg0, %arg1 : i32, i32
  }
}

</mosaic_0001>

<llo_original>
// kernel: tpu_custom_call.1
$region0: #{tpu_custom_call.1}
  #allocation0 [shape = 'u32[]', space=smem, size = 0x4, offset = 0x4, fixed_abs, tag = 'smem constant byte address 0x4 - core index']
  #allocation1 [shape = 'u32[144,128]{1,0:T(1,128)}', space=vmem, size = 0x12000, scoped, tag = 'internal scratch']
  #allocation2 [shape = 'f32[8,128]{1,0:T(8,128)}', space=vmem, size = 0x1000, scoped, tag = 'scratch operand']
  %s0 = inlined_call_operand.vmem [shape: f32[8,128], index: 0, kind: input, shape index: {}]
  %s1 = inlined_call_operand.hbm [shape: f32[128,128], index: 1, kind: input, shape index: {}]
  %s2 = inlined_call_operand.vmem [shape: f32[8,1], index: 2, kind: input, shape index: {}]
  %s3 = inlined_call_operand.vmem [shape: f32[1,128], index: 3, kind: input, shape index: {}]
  %s4 = inlined_call_operand.hbm [shape: f32[8,128], index: 4, kind: output, shape index: {}]
  %s5 = sld [smem:[#allocation0]]
  $region38: #{tpu_custom_call.1} parent=0
    _
  %s7 = ssub.s32 1, %s5
  %s8 = scalar_select 0, %s7, %s5
  $region1: #{tpu_custom_call.1} parent=0
    #allocation3 [shape = 'u8[65536]{0}', space=vmem, size = 0x10000, scoped, tag = 'input window, operand 1, single buffered']
    #allocation4 [shape = 's32[1]{0}', space=sflag, size = 0x4, scoped, tag = 'scoped memory for tpu_custom_call.1']
    #allocation5 [shape = 's32[1]{0}', space=sflag, size = 0x4, scoped, tag = 'scoped memory for tpu_custom_call.1']
    #allocation6 [shape = 'u8[4096]{0}', space=vmem, size = 0x1000, scoped, tag = 'output window, operand 0, single buffered']
    %9 = vsyncpa [#allocation4], 0
    %10 = vsyncpa [#allocation5], 0
    // Predicated region
    $region2: #{tpu_custom_call.1} parent=1 // pred_check
      _
    $region3: #{tpu_custom_call.1} parent=1 // pred_check_branch
      %12 = sbr.rel (0) target = $region5
    $region4: #{tpu_custom_call.1} parent=1 // pred_region
      _
    $region5: #{tpu_custom_call.1} parent=1 // pred_fallthru
      _
    // Predicated region
    $region6: #{tpu_custom_call.1} parent=1 // pred_check
      _
    $region7: #{tpu_custom_call.1} parent=1 // pred_check_branch
      %14 = sbr.rel (0) target = $region9
    $region8: #{tpu_custom_call.1} parent=1 // pred_region
      %s16 = ssub.s32 2048, 2048
      %17 = vsyncadd [#allocation4], %s16
      %s18 = sshll.u32 [#allocation3], 4
      %s19 = int_to_ptr.vmem [resolvable:$true] %s18
      %24 = dma.hbm_to_vmem [thread:$0]  %s1, 2048, %s19, [#allocation4], 128, 128, 8
    $region9: #{tpu_custom_call.1} parent=1 // pred_fallthru
      _
    // Predicated region
    $region10: #{tpu_custom_call.1} parent=1 // pred_check
      _
    $region11: #{tpu_custom_call.1} parent=1 // pred_check_branch
      %26 = sbr.rel (0) target = $region13
    $region12: #{tpu_custom_call.1} parent=1 // pred_region
      _
    $region13: #{tpu_custom_call.1} parent=1 // pred_fallthru
      _
    // Predicated region
    $region14: #{tpu_custom_call.1} parent=1 // pred_check
      _
    $region15: #{tpu_custom_call.1} parent=1 // pred_check_branch
      %28 = sbr.rel (0) target = $region17
    $region16: #{tpu_custom_call.1} parent=1 // pred_region
      _
    $region17: #{tpu_custom_call.1} parent=1 // pred_fallthru
      _
    // Predicated region
    $region18: #{tpu_custom_call.1} parent=1 // pred_check
      _
    $region19: #{tpu_custom_call.1} parent=1 // pred_check_branch
      %30 = sbr.rel (0) target = $region21
    $region20: #{tpu_custom_call.1} parent=1 // pred_region
      %31 = dma.done [#allocation4], 2048
    $region21: #{tpu_custom_call.1} parent=1 // pred_fallthru
      _
    %p32 = scmp.eq.s32.totalorder 0, 0
    // Predicated region
    $region22: #{tpu_custom_call.1} parent=1 // pred_check
      %p33 = pneg %p32
    $region23: #{tpu_custom_call.1} parent=1 // pred_check_branch
      %35 = sbr.rel (%p33) target = $region25
    $region24: #{tpu_custom_call.1} parent=1 // pred_region
      %36 = vst [vmem:[#allocation2] sm:$0xff] 0.0
    $region25: #{tpu_custom_call.1} parent=1 // pred_fallthru
      _
    %v37 = vld [vmem:[#allocation2] sm:$0xff]
    %v38 = vld [vmem:[%s0] sm:$0xff]
    %v39 = vld [vmem:[#allocation3] sm:$0xff]
    %v40 = vld [vmem:[#allocation3 + $0x8] sm:$0xff]
    %v41 = vld [vmem:[#allocation3 + $0x10] sm:$0xff]
    %v42 = vld [vmem:[#allocation3 + $0x18] sm:$0xff]
    %v43 = vld [vmem:[#allocation3 + $0x20] sm:$0xff]
    %v44 = vld [vmem:[#allocation3 + $0x28] sm:$0xff]
    %v45 = vld [vmem:[#allocation3 + $0x30] sm:$0xff]
    %v46 = vld [vmem:[#allocation3 + $0x38] sm:$0xff]
    %v47 = vld [vmem:[#allocation3 + $0x40] sm:$0xff]
    %v48 = vld [vmem:[#allocation3 + $0x48] sm:$0xff]
    %v49 = vld [vmem:[#allocation3 + $0x50] sm:$0xff]
    %v50 = vld [vmem:[#allocation3 + $0x58] sm:$0xff]
    %v51 = vld [vmem:[#allocation3 + $0x60] sm:$0xff]
    %v52 = vld [vmem:[#allocation3 + $0x68] sm:$0xff]
    %v53 = vld [vmem:[#allocation3 + $0x70] sm:$0xff]
    %v54 = vld [vmem:[#allocation3 + $0x78] sm:$0xff]
    %55 = vmatprep.subr.mxu0 0.0
    %56 = vmatpush1.msra.mxu0 %v39
    %57 = vmatprep.subr.mxu0 0.0
    %58 = vmatpush1.msra.mxu0 %v40
    %59 = vmatprep.subr.mxu0 0.0
    %60 = vmatpush1.msra.mxu0 %v41
    %61 = vmatprep.subr.mxu0 0.0
    %62 = vmatpush1.msra.mxu0 %v42
    %63 = vmatprep.subr.mxu0 0.0
    %64 = vmatpush1.msra.mxu0 %v43
    %65 = vmatprep.subr.mxu0 0.0
    %66 = vmatpush1.msra.mxu0 %v44
    %67 = vmatprep.subr.mxu0 0.0
    %68 = vmatpush1.msra.mxu0 %v45
    %69 = vmatprep.subr.mxu0 0.0
    %70 = vmatpush1.msra.mxu0 %v46
    %71 = vmatprep.subr.mxu0 0.0
    %72 = vmatpush1.msra.mxu0 %v47
    %73 = vmatprep.subr.mxu0 0.0
    %74 = vmatpush1.msra.mxu0 %v48
    %75 = vmatprep.subr.mxu0 0.0
    %76 = vmatpush1.msra.mxu0 %v49
    %77 = vmatprep.subr.mxu0 0.0
    %78 = vmatpush1.msra.mxu0 %v50
    %79 = vmatprep.subr.mxu0 0.0
    %80 = vmatpush1.msra.mxu0 %v51
    %81 = vmatprep.subr.mxu0 0.0
    %82 = vmatpush1.msra.mxu0 %v52
    %83 = vmatprep.subr.mxu0 0.0
    %84 = vmatpush1.msra.mxu0 %v53
    %85 = vmatprep.subr.mxu0 0.0
    %86 = vmatpush1.msra.mxu0 %v54
    %87 = vmatprep.subr.mxu0 0.0
    %88 = vmatpush1.msra.mxu0 0.0
    %89 = vmatprep.subr.mxu0 0.0
    %90 = vmatpush1.msra.mxu0 0.0
    %91 = vmatprep.subr.mxu0 0.0
    %92 = vmatpush1.msra.mxu0 0.0
    %93 = vmatprep.subr.mxu0 0.0
    %94 = vmatpush1.msra.mxu0 0.0
    %95 = vmatprep.subr.mxu0 0.0
    %96 = vmatpush1.msra.mxu0 0.0
    %97 = vmatprep.subr.mxu0 0.0
    %98 = vmatpush1.msra.mxu0 0.0
    %99 = vmatprep.subr.mxu0 0.0
    %100 = vmatpush1.msra.mxu0 0.0
    %101 = vmatprep.subr.mxu0 0.0
    %102 = vmatpush1.msra.mxu0 0.0
    %103 = vmatprep.subr.mxu0 0.0
    %104 = vmatpush1.msra.mxu0 0.0
    %105 = vmatprep.subr.mxu0 0.0
    %106 = vmatpush1.msra.mxu0 0.0
    %107 = vmatprep.subr.mxu0 0.0
    %108 = vmatpush1.msra.mxu0 0.0
    %109 = vmatprep.subr.mxu0 0.0
    %110 = vmatpush1.msra.mxu0 0.0
    %111 = vmatprep.subr.mxu0 0.0
    %112 = vmatpush1.msra.mxu0 0.0
    %113 = vmatprep.subr.mxu0 0.0
    %114 = vmatpush1.msra.mxu0 0.0
    %115 = vmatprep.subr.mxu0 0.0
    %116 = vmatpush1.msra.mxu0 0.0
    %117 = vmatprep.subr.mxu0 0.0
    %118 = vmatpush1.msra.mxu0 0.0
    %119 = vmatprep.mubr.f32.mxu0 0.0
    %120 = vmatmul.mubr.f32.gmra.mrb[0].mxu0 %v38
    %v121 = vpop.f32.mrb[0].mxu0
    %v122 = vadd.f32 0.0, %v121
    %v123 = vpop.f32.mrb[0].mxu0
    %124 = vdwg.mxu0
    %v125 = vadd.f32 %v37, %v122
    %126 = vst [vmem:[#allocation2] sm:$0xff] %v125
    // Predicated region
    $region26: #{tpu_custom_call.1} parent=1 // pred_check
      %p127 = pneg %p32
    $region27: #{tpu_custom_call.1} parent=1 // pred_check_branch
      %129 = sbr.rel (%p127) target = $region29
    $region28: #{tpu_custom_call.1} parent=1 // pred_region
      %v130 = vld [vmem:[#allocation2] sm:$0xff]
      %v131 = vld [vmem:[%s2] sm:$0xff]
      %v132 = vld [vmem:[%s3] sm:$0x1]
      %134 = vset.pattern.permute.xlu0 0
      %135 = vperm.xlu0 %134, %v131
      %v136 = vpop.permute.xlu0 %135
      %v139 = vlaneseq
      %v140 = vshrl.u32 %v139, 7
      %v141 = vsub.s32 0, %v140
      %v142 = vrot.slane %v132, %v141
      %v144 = vmul.f32 %v136, %v142
      %v145 = vadd.f32 %v130, %v144
      %146 = vst [vmem:[#allocation6] sm:$0xff] %v145
    $region29: #{tpu_custom_call.1} parent=1 // pred_fallthru
      _
    // Predicated region
    $region30: #{tpu_custom_call.1} parent=1 // pred_check
      _
    $region31: #{tpu_custom_call.1} parent=1 // pred_check_branch
      %148 = sbr.rel (0) target = $region33
    $region32: #{tpu_custom_call.1} parent=1 // pred_region
      %s150 = ssub.s32 128, 128
      %151 = vsyncadd [#allocation5], %s150
      %s153 = sshll.u32 [#allocation6], 4
      %s154 = int_to_ptr.vmem [resolvable:$true] %s153
      %156 = dma.vmem_to_hbm [thread:$0]  %s154, 128, %s4, [#allocation5]
    $region33: #{tpu_custom_call.1} parent=1 // pred_fallthru
      _
    // Predicated region
    $region34: #{tpu_custom_call.1} parent=1 // pred_check
      _
    $region35: #{tpu_custom_call.1} parent=1 // pred_check_branch
      %158 = sbr.rel (0) target = $region37
    $region36: #{tpu_custom_call.1} parent=1 // pred_region
      %159 = dma.done [#allocation5], 128
    $region37: #{tpu_custom_call.1} parent=1 // pred_fallthru
      _
    %160 = vsyncpa [#allocation4], 1
    %161 = vsyncpa [#allocation5], 1

</llo_original>
